<compile_context>
chip_gen: v7x
topology: tpu7x:2x2x1
jax: 0.10.0
libtpu: 0.0.40
codegen_flags: <defaults>
</compile_context>

<pallas_src>
import jax
import jax.numpy as jnp
from jax.experimental import pallas as pl
from jax.experimental.pallas import tpu as pltpu


# ----------------------------------------------------------------------------- kernel
def camera_transf_kernel(p_ref, x_ref, o_ref):
    # p_ref: SMEM f32[12] = exp_i[:3, :4] flattened row-major -> [R|t] rows.
    # x_ref / o_ref: VMEM (4, S, 128) blocks.
    x0 = x_ref[0]          # (S, 128) dense slabs, all 8 sublanes used
    x1 = x_ref[1]
    x2 = x_ref[2]
    x3 = x_ref[3]
    for i in range(3):     # static unroll: 4 scalar*vector FMAs per output row
        o_ref[i] = (p_ref[4 * i + 0] * x0
                    + p_ref[4 * i + 1] * x1
                    + p_ref[4 * i + 2] * x2
                    + p_ref[4 * i + 3] * x3)
    o_ref[3] = x3          # last row of exp_i is [0, 0, 0, 1]


# ----------------------------------------------------------------------------- wrapper
def _build_exp_i(w, v, theta):
    """4x4 SE(3) exponential map, matching the PyTorch module's math exactly."""
    w = jnp.asarray(w, jnp.float32)
    v = jnp.asarray(v, jnp.float32)
    theta = jnp.asarray(theta, jnp.float32)
    zero = jnp.zeros((), jnp.float32)
    W = jnp.stack([
        jnp.stack([zero, -w[2], w[1]]),
        jnp.stack([w[2], zero, -w[0]]),
        jnp.stack([-w[1], w[0], zero]),
    ])
    I3 = jnp.eye(3, dtype=jnp.float32)
    WW = W @ W
    st = jnp.sin(theta)
    ct = jnp.cos(theta)
    R = I3 + st * W + (1.0 - ct) * WW
    M = theta * I3 + (1.0 - ct) * W + (theta - st) * WW
    t = M @ v
    exp_i = jnp.zeros((4, 4), jnp.float32)
    exp_i = exp_i.at[:3, :3].set(R)
    exp_i = exp_i.at[:3, 3].set(t)
    exp_i = exp_i.at[3, 3].set(1.0)
    return exp_i


def _camera_transf_pallas(exp_i, x, *, block_groups=1024):
    """Pallas path for large N. x: (4, N) f32.  block_groups * 128 lanes per block."""
    n = x.shape[1]
    n_pad = ((n + 127) // 128) * 128
    if n_pad != n:
        x = jnp.pad(x, ((0, 0), (0, n_pad - n)))
    g = n_pad // 128                      # number of 128-lane groups
    x3 = x.reshape(4, g, 128)             # sublane-dense layout (free reshape)

    if g <= block_groups:
        s = g                             # full-extent block (exempt from /8 rule)
    else:
        s = max(8, (block_groups // 8) * 8)   # multiple of 8 sublanes
    grid = (pl.cdiv(g, s),)               # ragged last block handled by Pallas

    p = exp_i[:3, :].reshape(-1)          # 12 scalars: [R row | t] per output row

    out = pl.pallas_call(
        camera_transf_kernel,
        out_shape=jax.ShapeDtypeStruct((4, g, 128), jnp.float32),
        grid=grid,
        in_specs=[
            pl.BlockSpec(memory_space=pltpu.MemorySpace.SMEM),       # exp_i scalars
            pl.BlockSpec((4, s, 128), lambda j: (0, j, 0)),          # x, lane-group tiled
        ],
        out_specs=pl.BlockSpec((4, s, 128), lambda j: (0, j, 0)),
        compiler_params=pltpu.CompilerParams(
            dimension_semantics=("parallel",)),                      # 2-TC split on v7x
    )(p, x3)

    out = out.reshape(4, n_pad)
    return out[:, :n] if n_pad != n else out


def camera_transf_forward(w, v, theta, x, *, block_groups=1024, small_n_threshold=4096):
    """Forward pass of camera_transf: exp_i(w, v, theta) @ x, x of shape (4, N)."""
    x = jnp.asarray(x, jnp.float32)
    assert x.ndim == 2 and x.shape[0] == 4
    n = x.shape[1]
    exp_i = _build_exp_i(w, v, theta)
    if n <= small_n_threshold:
        # Typical module input is a 4x4 pose: the fused XLA path is strictly faster
        # than any standalone kernel launch and fuses with surrounding ops.
        return exp_i @ x
    return _camera_transf_pallas(exp_i, x, block_groups=block_groups)


# ----------------------------------------------------------------------------- reference
def camera_transf_reference(w, v, theta, x):
    """Pure-JAX reference matching the PyTorch module."""
    return _build_exp_i(w, v, theta) @ jnp.asarray(x, jnp.float32)


# ----------------------------------------------------------------------------- test
if __name__ == "__main__":
    key = jax.random.PRNGKey(0)
    kw, kv, kt, kx, kx2 = jax.random.split(key, 5)

    # deterministic parameter init mirroring torch.normal(0, 1e-6, ...)
    w = jax.random.normal(kw, (3,), jnp.float32) * 1e-6
    v = jax.random.normal(kv, (3,), jnp.float32) * 1e-6
    theta = jax.random.normal(kt, (), jnp.float32) * 1e-6

    # case 1: 4x4 camera pose (the module's typical input) -- dispatched to fused JAX path
    x = jax.random.normal(kx, (4, 4), jnp.float32)
    out = jax.block_until_ready(camera_transf_forward(w, v, theta, x))
    ref = camera_transf_reference(w, v, theta, x)
    assert out.shape == (4, 4)
    assert jnp.allclose(out, ref, atol=1e-5, rtol=1e-5)

    # case 2: same 4x4 input forced through the Pallas kernel (padding + single block)
    out_k = jax.block_until_ready(
        camera_transf_forward(w, v, theta, x, small_n_threshold=0))
    assert out_k.shape == (4, 4)
    assert jnp.allclose(out_k, ref, atol=1e-5, rtol=1e-5)

    # case 3: non-128-aligned lane count exercising the tiled multi-block grid path
    x2 = jax.random.normal(kx2, (4, 1300), jnp.float32)
    out2 = jax.block_until_ready(
        camera_transf_forward(w, v, theta, x2, small_n_threshold=0, block_groups=8))
    ref2 = camera_transf_reference(w, v, theta, x2)
    assert out2.shape == (4, 1300)
    assert jnp.allclose(out2, ref2, atol=1e-5, rtol=1e-5)

    print("KERNEL_OK")
</pallas_src>

<mosaic_0001>
module attributes {stable_mosaic.version = 11 : i64} {
  func.func @camera_transf_kernel(%arg0: i32, %arg1: memref<12xf32, #tpu.memory_space<smem>>, %arg2: memref<4x1x128xf32, #tpu.memory_space<vmem>>, %arg3: memref<4x1x128xf32, #tpu.memory_space<vmem>>) attributes {dimension_semantics = [#tpu.dimension_semantics<parallel>], iteration_bounds = array<i64: 1>, scalar_prefetch = 0 : i64, scratch_operands = 0 : i64, tpu.core_type = #tpu.core_type<tc>, window_params = [{transform_indices = @transform_0, window_bounds = array<i64: 12>}, {transform_indices = @transform_1, window_bounds = array<i64: 4, 1, 128>}, {transform_indices = @transform_2, window_bounds = array<i64: 4, 1, 128>}]} {
    %c0 = arith.constant 0 : index
    %c0_0 = arith.constant 0 : index
    %c0_1 = arith.constant 0 : index
    %0 = vector.load %arg2[%c0, %c0_0, %c0_1] : memref<4x1x128xf32, #tpu.memory_space<vmem>>, vector<1x1x128xf32>
    %1 = vector.shape_cast %0 : vector<1x1x128xf32> to vector<1x128xf32>
    %c1 = arith.constant 1 : index
    %c0_2 = arith.constant 0 : index
    %c0_3 = arith.constant 0 : index
    %2 = vector.load %arg2[%c1, %c0_2, %c0_3] : memref<4x1x128xf32, #tpu.memory_space<vmem>>, vector<1x1x128xf32>
    %3 = vector.shape_cast %2 : vector<1x1x128xf32> to vector<1x128xf32>
    %c2 = arith.constant 2 : index
    %c0_4 = arith.constant 0 : index
    %c0_5 = arith.constant 0 : index
    %4 = vector.load %arg2[%c2, %c0_4, %c0_5] : memref<4x1x128xf32, #tpu.memory_space<vmem>>, vector<1x1x128xf32>
    %5 = vector.shape_cast %4 : vector<1x1x128xf32> to vector<1x128xf32>
    %c3 = arith.constant 3 : index
    %c0_6 = arith.constant 0 : index
    %c0_7 = arith.constant 0 : index
    %6 = vector.load %arg2[%c3, %c0_6, %c0_7] : memref<4x1x128xf32, #tpu.memory_space<vmem>>, vector<1x1x128xf32>
    %7 = vector.shape_cast %6 : vector<1x1x128xf32> to vector<1x128xf32>
    %c0_8 = arith.constant 0 : index
    %8 = memref.load %arg1[%c0_8] : memref<12xf32, #tpu.memory_space<smem>>
    %9 = vector.broadcast %8 : f32 to vector<1x128xf32>
    %10 = arith.mulf %9, %1 : vector<1x128xf32>
    %c1_9 = arith.constant 1 : index
    %11 = memref.load %arg1[%c1_9] : memref<12xf32, #tpu.memory_space<smem>>
    %12 = vector.broadcast %11 : f32 to vector<1x128xf32>
    %13 = arith.mulf %12, %3 : vector<1x128xf32>
    %14 = arith.addf %10, %13 : vector<1x128xf32>
    %c2_10 = arith.constant 2 : index
    %15 = memref.load %arg1[%c2_10] : memref<12xf32, #tpu.memory_space<smem>>
    %16 = vector.broadcast %15 : f32 to vector<1x128xf32>
    %17 = arith.mulf %16, %5 : vector<1x128xf32>
    %18 = arith.addf %14, %17 : vector<1x128xf32>
    %c3_11 = arith.constant 3 : index
    %19 = memref.load %arg1[%c3_11] : memref<12xf32, #tpu.memory_space<smem>>
    %20 = vector.broadcast %19 : f32 to vector<1x128xf32>
    %21 = arith.mulf %20, %7 : vector<1x128xf32>
    %22 = arith.addf %18, %21 : vector<1x128xf32>
    %c0_12 = arith.constant 0 : index
    %c0_13 = arith.constant 0 : index
    %c0_14 = arith.constant 0 : index
    %23 = vector.load %arg3[%c0_12, %c0_13, %c0_14] : memref<4x1x128xf32, #tpu.memory_space<vmem>>, vector<1x1x128xf32>
    %24 = vector.shape_cast %23 : vector<1x1x128xf32> to vector<1x128xf32>
    %25 = vector.shape_cast %22 : vector<1x128xf32> to vector<1x1x128xf32>
    tpu.vector_store %arg3[%c0_12, %c0_13, %c0_14], %25 {strides = array<i32>} : memref<4x1x128xf32, #tpu.memory_space<vmem>>, vector<1x1x128xf32>,
    %c4 = arith.constant 4 : index
    %26 = memref.load %arg1[%c4] : memref<12xf32, #tpu.memory_space<smem>>
    %27 = vector.broadcast %26 : f32 to vector<1x128xf32>
    %28 = arith.mulf %27, %1 : vector<1x128xf32>
    %c5 = arith.constant 5 : index
    %29 = memref.load %arg1[%c5] : memref<12xf32, #tpu.memory_space<smem>>
    %30 = vector.broadcast %29 : f32 to vector<1x128xf32>
    %31 = arith.mulf %30, %3 : vector<1x128xf32>
    %32 = arith.addf %28, %31 : vector<1x128xf32>
    %c6 = arith.constant 6 : index
    %33 = memref.load %arg1[%c6] : memref<12xf32, #tpu.memory_space<smem>>
    %34 = vector.broadcast %33 : f32 to vector<1x128xf32>
    %35 = arith.mulf %34, %5 : vector<1x128xf32>
    %36 = arith.addf %32, %35 : vector<1x128xf32>
    %c7 = arith.constant 7 : index
    %37 = memref.load %arg1[%c7] : memref<12xf32, #tpu.memory_space<smem>>
    %38 = vector.broadcast %37 : f32 to vector<1x128xf32>
    %39 = arith.mulf %38, %7 : vector<1x128xf32>
    %40 = arith.addf %36, %39 : vector<1x128xf32>
    %c1_15 = arith.constant 1 : index
    %c0_16 = arith.constant 0 : index
    %c0_17 = arith.constant 0 : index
    %41 = vector.load %arg3[%c1_15, %c0_16, %c0_17] : memref<4x1x128xf32, #tpu.memory_space<vmem>>, vector<1x1x128xf32>
    %42 = vector.shape_cast %41 : vector<1x1x128xf32> to vector<1x128xf32>
    %43 = vector.shape_cast %40 : vector<1x128xf32> to vector<1x1x128xf32>
    tpu.vector_store %arg3[%c1_15, %c0_16, %c0_17], %43 {strides = array<i32>} : memref<4x1x128xf32, #tpu.memory_space<vmem>>, vector<1x1x128xf32>,
    %c8 = arith.constant 8 : index
    %44 = memref.load %arg1[%c8] : memref<12xf32, #tpu.memory_space<smem>>
    %45 = vector.broadcast %44 : f32 to vector<1x128xf32>
    %46 = arith.mulf %45, %1 : vector<1x128xf32>
    %c9 = arith.constant 9 : index
    %47 = memref.load %arg1[%c9] : memref<12xf32, #tpu.memory_space<smem>>
    %48 = vector.broadcast %47 : f32 to vector<1x128xf32>
    %49 = arith.mulf %48, %3 : vector<1x128xf32>
    %50 = arith.addf %46, %49 : vector<1x128xf32>
    %c10 = arith.constant 10 : index
    %51 = memref.load %arg1[%c10] : memref<12xf32, #tpu.memory_space<smem>>
    %52 = vector.broadcast %51 : f32 to vector<1x128xf32>
    %53 = arith.mulf %52, %5 : vector<1x128xf32>
    %54 = arith.addf %50, %53 : vector<1x128xf32>
    %c11 = arith.constant 11 : index
    %55 = memref.load %arg1[%c11] : memref<12xf32, #tpu.memory_space<smem>>
    %56 = vector.broadcast %55 : f32 to vector<1x128xf32>
    %57 = arith.mulf %56, %7 : vector<1x128xf32>
    %58 = arith.addf %54, %57 : vector<1x128xf32>
    %c2_18 = arith.constant 2 : index
    %c0_19 = arith.constant 0 : index
    %c0_20 = arith.constant 0 : index
    %59 = vector.load %arg3[%c2_18, %c0_19, %c0_20] : memref<4x1x128xf32, #tpu.memory_space<vmem>>, vector<1x1x128xf32>
    %60 = vector.shape_cast %59 : vector<1x1x128xf32> to vector<1x128xf32>
    %61 = vector.shape_cast %58 : vector<1x128xf32> to vector<1x1x128xf32>
    tpu.vector_store %arg3[%c2_18, %c0_19, %c0_20], %61 {strides = array<i32>} : memref<4x1x128xf32, #tpu.memory_space<vmem>>, vector<1x1x128xf32>,
    %c3_21 = arith.constant 3 : index
    %c0_22 = arith.constant 0 : index
    %c0_23 = arith.constant 0 : index
    %62 = vector.load %arg3[%c3_21, %c0_22, %c0_23] : memref<4x1x128xf32, #tpu.memory_space<vmem>>, vector<1x1x128xf32>
    %63 = vector.shape_cast %62 : vector<1x1x128xf32> to vector<1x128xf32>
    %64 = vector.shape_cast %7 : vector<1x128xf32> to vector<1x1x128xf32>
    tpu.vector_store %arg3[%c3_21, %c0_22, %c0_23], %64 {strides = array<i32>} : memref<4x1x128xf32, #tpu.memory_space<vmem>>, vector<1x1x128xf32>,
    return
  }
  func.func @transform_0(%arg0: i32) -> i32 {
    %c0_i32 = arith.constant 0 : i32
    %c0_i32_0 = arith.constant 0 : i32
    return %c0_i32 : i32
  }
  func.func @transform_1(%arg0: i32) -> (i32, i32, i32) {
    %c0_i32 = arith.constant 0 : i32
    %c0_i32_0 = arith.constant 0 : i32
    %c0_i32_1 = arith.constant 0 : i32
    return %c0_i32, %arg0, %c0_i32_0 : i32, i32, i32
  }
  func.func @transform_2(%arg0: i32) -> (i32, i32, i32) {
    %c0_i32 = arith.constant 0 : i32
    %c0_i32_0 = arith.constant 0 : i32
    %c0_i32_1 = arith.constant 0 : i32
    return %c0_i32, %arg0, %c0_i32_0 : i32, i32, i32
  }
}

</mosaic_0001>

<llo_original>
// kernel: tpu_custom_call.1
$region0: #{tpu_custom_call.1}
  #allocation0 [shape = 'u32[]', space=smem, size = 0x4, offset = 0x4, fixed_abs, tag = 'smem constant byte address 0x4 - core index']
  #allocation1 [shape = 'u32[144,128]{1,0:T(1,128)}', space=vmem, size = 0x12000, scoped, tag = 'internal scratch']
  %s0 = inlined_call_operand.hbm [shape: f32[12], index: 0, kind: input, shape index: {}]
  %s1 = inlined_call_operand.hbm [shape: f32[4,1,128], index: 1, kind: input, shape index: {}]
  %s2 = inlined_call_operand.hbm [shape: f32[4,1,128], index: 2, kind: output, shape index: {}]
  %s3 = sld [smem:[#allocation0]]
  $region26: #{tpu_custom_call.1} parent=0
    _
  %s5 = ssub.s32 1, %s3
  %s6 = scalar_select 0, %s5, %s3
  $region1: #{tpu_custom_call.1} parent=0
    #allocation2 [shape = 'u8[512]{0}', space=smem, size = 0x200, scoped, tag = 'input window, operand 0, single buffered']
    #allocation3 [shape = 's32[1]{0}', space=sflag, size = 0x4, scoped, tag = 'scoped memory for tpu_custom_call.1']
    #allocation4 [shape = 's32[1]{0}', space=sflag, size = 0x4, scoped, tag = 'scoped memory for tpu_custom_call.1']
    #allocation5 [shape = 's32[1]{0}', space=sflag, size = 0x4, scoped, tag = 'scoped memory for tpu_custom_call.1']
    #allocation6 [shape = 'u8[2048]{0}', space=vmem, size = 0x800, scoped, tag = 'input window, operand 1, single buffered']
    #allocation7 [shape = 'u8[2048]{0}', space=vmem, size = 0x800, scoped, tag = 'output window, operand 0, single buffered']
    %7 = vsyncpa [#allocation5], 0
    %8 = vsyncpa [#allocation3], 0
    %9 = vsyncpa [#allocation4], 0
    // Predicated region
    $region2: #{tpu_custom_call.1} parent=1 // pred_check
      _
    $region3: #{tpu_custom_call.1} parent=1 // pred_check_branch
      %11 = sbr.rel (0) target = $region5
    $region4: #{tpu_custom_call.1} parent=1 // pred_region
      %s13 = ssub.s32 16, 16
      %14 = vsyncadd [#allocation5], %s13
      %17 = dma.hbm_to_smem %s0, 16, [#allocation2], [#allocation5]
    $region5: #{tpu_custom_call.1} parent=1 // pred_fallthru
      _
    // Predicated region
    $region6: #{tpu_custom_call.1} parent=1 // pred_check
      _
    $region7: #{tpu_custom_call.1} parent=1 // pred_check_branch
      %19 = sbr.rel (0) target = $region9
    $region8: #{tpu_custom_call.1} parent=1 // pred_region
      %s21 = ssub.s32 64, 64
      %22 = vsyncadd [#allocation3], %s21
      %s23 = sshll.u32 [#allocation6], 4
      %s24 = int_to_ptr.vmem [resolvable:$true] %s23
      %29 = dma.hbm_to_vmem [thread:$0]  %s1, 64, %s24, [#allocation3], 16, 16, 1
    $region9: #{tpu_custom_call.1} parent=1 // pred_fallthru
      _
    // Predicated region
    $region10: #{tpu_custom_call.1} parent=1 // pred_check
      _
    $region11: #{tpu_custom_call.1} parent=1 // pred_check_branch
      %31 = sbr.rel (0) target = $region13
    $region12: #{tpu_custom_call.1} parent=1 // pred_region
      %32 = dma.done [#allocation5], 16
    $region13: #{tpu_custom_call.1} parent=1 // pred_fallthru
      _
    // Predicated region
    $region14: #{tpu_custom_call.1} parent=1 // pred_check
      _
    $region15: #{tpu_custom_call.1} parent=1 // pred_check_branch
      %34 = sbr.rel (0) target = $region17
    $region16: #{tpu_custom_call.1} parent=1 // pred_region
      %35 = dma.done [#allocation3], 64
    $region17: #{tpu_custom_call.1} parent=1 // pred_fallthru
      _
    %36 = sfence
    %v37 = vld [vmem:[#allocation6] sm:$0x1]
    %s38 = scalar_lea.vmem [#allocation6], 1
    %v39 = vld [vmem:[%s38] sm:$0x1]
    %s40 = scalar_lea.vmem [#allocation6], 2
    %v41 = vld [vmem:[%s40] sm:$0x1]
    %s42 = scalar_lea.vmem [#allocation6], 3
    %v43 = vld [vmem:[%s42] sm:$0x1]
    %s44 = sld [smem:[#allocation2]]
    %v45 = vstv %s44
    %v46 = vmul.f32 %v45, %v37
    %s47 = sld [smem:[#allocation2 + $0x1]]
    %v48 = vstv %s47
    %v49 = vmul.f32 %v48, %v39
    %v50 = vadd.f32 %v46, %v49
    %s51 = sld [smem:[#allocation2 + $0x2]]
    %v52 = vstv %s51
    %v53 = vmul.f32 %v52, %v41
    %v54 = vadd.f32 %v50, %v53
    %s55 = sld [smem:[#allocation2 + $0x3]]
    %v56 = vstv %s55
    %v57 = vmul.f32 %v56, %v43
    %v58 = vadd.f32 %v54, %v57
    %59 = vst [vmem:[#allocation7] sm:$0x1] %v58
    %s60 = sld [smem:[#allocation2 + $0x4]]
    %v61 = vstv %s60
    %v62 = vmul.f32 %v61, %v37
    %s63 = sld [smem:[#allocation2 + $0x5]]
    %v64 = vstv %s63
    %v65 = vmul.f32 %v64, %v39
    %v66 = vadd.f32 %v62, %v65
    %s67 = sld [smem:[#allocation2 + $0x6]]
    %v68 = vstv %s67
    %v69 = vmul.f32 %v68, %v41
    %v70 = vadd.f32 %v66, %v69
    %s71 = sld [smem:[#allocation2 + $0x7]]
    %v72 = vstv %s71
    %v73 = vmul.f32 %v72, %v43
    %v74 = vadd.f32 %v70, %v73
    %s75 = scalar_lea.vmem [#allocation7], 1
    %76 = vst [vmem:[%s75] sm:$0x1] %v74
    %s77 = sld [smem:[#allocation2 + $0x8]]
    %v78 = vstv %s77
    %v79 = vmul.f32 %v78, %v37
    %s80 = sld [smem:[#allocation2 + $0x9]]
    %v81 = vstv %s80
    %v82 = vmul.f32 %v81, %v39
    %v83 = vadd.f32 %v79, %v82
    %s84 = sld [smem:[#allocation2 + $0xa]]
    %v85 = vstv %s84
    %v86 = vmul.f32 %v85, %v41
    %v87 = vadd.f32 %v83, %v86
    %s88 = sld [smem:[#allocation2 + $0xb]]
    %v89 = vstv %s88
    %v90 = vmul.f32 %v89, %v43
    %v91 = vadd.f32 %v87, %v90
    %s92 = scalar_lea.vmem [#allocation7], 2
    %93 = vst [vmem:[%s92] sm:$0x1] %v91
    %s94 = scalar_lea.vmem [#allocation7], 3
    %95 = vst [vmem:[%s94] sm:$0x1] %v43
    // Predicated region
    $region18: #{tpu_custom_call.1} parent=1 // pred_check
      _
    $region19: #{tpu_custom_call.1} parent=1 // pred_check_branch
      %97 = sbr.rel (0) target = $region21
    $region20: #{tpu_custom_call.1} parent=1 // pred_region
      %s99 = ssub.s32 64, 64
      %100 = vsyncadd [#allocation4], %s99
      %s101 = sshll.u32 [#allocation7], 4
      %s102 = int_to_ptr.vmem [resolvable:$true] %s101
      %107 = dma.vmem_to_hbm [thread:$0]  %s102, 64, %s2, [#allocation4], 16, 16, 1
    $region21: #{tpu_custom_call.1} parent=1 // pred_fallthru
      _
    // Predicated region
    $region22: #{tpu_custom_call.1} parent=1 // pred_check
      _
    $region23: #{tpu_custom_call.1} parent=1 // pred_check_branch
      %109 = sbr.rel (0) target = $region25
    $region24: #{tpu_custom_call.1} parent=1 // pred_region
      %110 = dma.done [#allocation4], 64
    $region25: #{tpu_custom_call.1} parent=1 // pred_fallthru
      _
    %111 = vsyncpa [#allocation3], 1
    %112 = vsyncpa [#allocation4], 1
    %113 = vsyncpa [#allocation5], 1

</llo_original>
